<compile_context>
chip_gen: v7x
topology: tpu7x:2x2x1
jax: 0.10.0
libtpu: 0.0.40
codegen_flags: <defaults>
</compile_context>

<pallas_src>
import numpy as np
import jax
import jax.numpy as jnp
from jax.experimental import pallas as pl
from jax.experimental.pallas import tpu as pltpu

# ---- static configuration (small synthetic shapes) ----
POS_DIM = 2
ND = 16                                   # neighbor_dim == anchor_dim
OBS_DIM = POS_DIM + 2 * ND + POS_DIM      # 36
ACTION_DIM = 4
HIDDEN_DIMS = (256, 256)
BATCH = 8

# fused / padded layout
IN_LANES = 128                            # packed input lanes: obs 0:36, noise 64:68
NOISE_OFF = 64                            # noise lanes inside the input slab
NOISE_SHIFT = IN_LANES - NOISE_OFF        # 64: direction-agnostic rotate amount
FUSED = 384                               # 64+128+128+32 = 352 -> padded to 3*128
REAL_FUSED = 352
O_SP, O_NB, O_AN, O_MO = 0, 64, 192, 320  # lane offsets of each branch
OUT_LANES = 128                           # packed output width

LOG2PI = float(np.log(2.0 * np.pi))


# --------------------------------------------------------------------------
# Kernel
# --------------------------------------------------------------------------
def actor_kernel(x_ref, w1_ref, wf_ref, bbw2_ref, headw_ref, bias_ref, out_ref):
    f32 = jnp.float32
    A = ACTION_DIM
    H0, H1 = HIDDEN_DIMS

    bias = bias_ref[...]                        # (8, FUSED) f32
    b1 = bias[0:1, :]                           # fused branch layer-1 bias     (1, 384)
    bfold = bias[1:2, :H0]                      # folded (branch-L2 @ bb-L1)    (1, 256)
    bb_b2 = bias[2:3, :H1]                      # backbone L2 bias              (1, 256)
    head_b = bias[3:4, :OUT_LANES]              # mu bias dup'd at [0:A],[A:2A] (1, 128)
    std_act = bias[4:5, :OUT_LANES]             # exp(log_std) at lanes [0:A]
    std_pack = bias[5:6, :OUT_LANES]            # exp(log_std) at [2A:3A], logp const at [3A]

    x = x_ref[...]                              # (TB, 128) bf16: obs @ 0:36, noise @ 64:68

    def mm(a, w_ref):                           # bf16 MXU matmul, f32 accumulation
        return jnp.dot(a.astype(jnp.bfloat16), w_ref[...], preferred_element_type=f32)

    # branch layer-1 (block-structured) + ReLU
    h = jnp.maximum(mm(x, w1_ref) + b1, 0.0)         # (TB, 384)
    # folded [branch layer-2 @ backbone L1] + ReLU; Dropout = identity (eval)
    h = jnp.maximum(mm(h, wf_ref) + bfold, 0.0)      # (TB, 256)
    # backbone L2 + ReLU
    h = jnp.maximum(mm(h, bbw2_ref) + bb_b2, 0.0)    # (TB, 256)
    # head: mu duplicated into lanes [0:A] and [A:2A]; tanh(0)=0 elsewhere
    mu_all = jnp.tanh(mm(h, headw_ref) + head_b)     # (TB, 128)

    # recover noise from the input padding lanes: XLU roll + lane mask
    lane = jax.lax.broadcasted_iota(jnp.int32, mu_all.shape, 1)
    rolled = pltpu.roll(x.astype(f32), shift=NOISE_SHIFT, axis=1)
    noise = jnp.where(lane < A, rolled, 0.0)         # noise at [0:A], 0 elsewhere

    # Gaussian log prob: action - mu == std * noise exactly, so
    #   logp = -0.5 * sum(noise^2) + C,  C = sum(-log_std - 0.5*log(2*pi))  (host-side)
    logp = -0.5 * jnp.sum(noise * noise, axis=1, keepdims=True)   # (TB, 1)

    # pack: [0:A]=action, [A:2A]=mu, [2A:3A]=std, [3A]=logp (+C via std_pack), rest 0
    out = mu_all + std_act * noise + std_pack + jnp.where(lane == 3 * A, logp, 0.0)
    out_ref[...] = out


# --------------------------------------------------------------------------
# Wrapper
# --------------------------------------------------------------------------
def _pick_tile(B):
    if B < 128:
        return max(8, ((B + 7) // 8) * 8)
    if B >= 512:
        return 256      # fills the 256-wide MXU (v6e/v7x) while keeping >= 2 grid steps (v7x megacore)
    return 128


def optimized_actor_forward(obs, noise, packed):
    """packed = (w1, wf, bbw2, headw, bias_slab) from pack_params()."""
    w1, wf, bbw2, headw, bias = packed
    B = obs.shape[0]
    A = ACTION_DIM
    H0, H1 = HIDDEN_DIMS

    TB = _pick_tile(B)
    B_pad = ((B + TB - 1) // TB) * TB

    bf16 = jnp.bfloat16
    # single packed bf16 input slab: obs at lanes [0:36], noise at lanes [64:68]
    x = jnp.zeros((B_pad, IN_LANES), bf16)
    x = x.at[:B, :OBS_DIM].set(obs.astype(bf16))
    x = x.at[:B, NOISE_OFF:NOISE_OFF + A].set(noise.astype(bf16))

    grid = (B_pad // TB,)

    flops = 2 * B_pad * (IN_LANES * FUSED + FUSED * H0 + H0 * H1 + H1 * OUT_LANES)
    transcendentals = B_pad * OUT_LANES   # tanh
    bytes_accessed = (2 * B_pad * IN_LANES            # bf16 input
                      + 4 * B_pad * OUT_LANES         # f32 output
                      + sum(int(np.prod(p.shape)) * p.dtype.itemsize for p in packed))

    def resident(arr):
        # full-array block, constant index -> stays VMEM-resident across grid steps
        return pl.BlockSpec(arr.shape, lambda i: (0, 0))

    out = pl.pallas_call(
        actor_kernel,
        out_shape=jax.ShapeDtypeStruct((B_pad, OUT_LANES), jnp.float32),
        grid=grid,
        in_specs=[pl.BlockSpec((TB, IN_LANES), lambda i: (i, 0)),
                  resident(w1), resident(wf), resident(bbw2),
                  resident(headw), resident(bias)],
        out_specs=pl.BlockSpec((TB, OUT_LANES), lambda i: (i, 0)),
        compiler_params=pltpu.CompilerParams(dimension_semantics=("parallel",)),
        cost_estimate=pl.CostEstimate(flops=flops,
                                      transcendentals=transcendentals,
                                      bytes_accessed=bytes_accessed),
    )(x, w1, wf, bbw2, headw, bias)

    action = out[:B, 0:A]
    mu = out[:B, A:2 * A]
    std = out[:B, 2 * A:3 * A]
    logp = out[:B, 3 * A:3 * A + 1]
    return action, logp, mu, std


# --------------------------------------------------------------------------
# Parameter construction
# --------------------------------------------------------------------------
def init_params(key):
    """Per-layer params mirroring _init_weights: orthogonal(gain=sqrt(2)), bias=0.
    Weight layout is (in_features, out_features); biases are 1-D."""
    ortho = jax.nn.initializers.orthogonal(scale=float(np.sqrt(2.0)))

    def lin(k, fan_in, fan_out):
        w = ortho(k, (fan_in, fan_out), jnp.float32)
        b = jnp.zeros((fan_out,), jnp.float32)
        return [w, b]

    ks = jax.random.split(key, 11)
    p = []
    p += lin(ks[0], POS_DIM, 64) + lin(ks[1], 64, 64)            # self_pos_encoder
    p += lin(ks[2], ND, 128) + lin(ks[3], 128, 128)              # neighbor_fc
    p += lin(ks[4], ND, 128) + lin(ks[5], 128, 128)              # anchor_fc
    p += lin(ks[6], POS_DIM, 32) + lin(ks[7], 32, 32)            # motion_encoder
    p += lin(ks[8], 64 + 128 + 128 + 32, HIDDEN_DIMS[0])         # backbone L1
    p += lin(ks[9], HIDDEN_DIMS[0], HIDDEN_DIMS[1])              # backbone L2
    p += lin(ks[10], HIDDEN_DIMS[1], ACTION_DIM)                 # mu head
    p.append(jnp.zeros((ACTION_DIM,), jnp.float32))              # log_std
    return tuple(p)


def pack_params(params):
    """Fuse/pad/fold per-layer params into the 5 slabs consumed by the kernel."""
    (sp_w1, sp_b1, sp_w2, sp_b2,
     nb_w1, nb_b1, nb_w2, nb_b2,
     an_w1, an_b1, an_w2, an_b2,
     mo_w1, mo_b1, mo_w2, mo_b2,
     bb_w1, bb_b1, bb_w2, bb_b2,
     mu_w, mu_b, log_std) = params
    f32, bf16 = jnp.float32, jnp.bfloat16
    A = ACTION_DIM
    H0, H1 = HIDDEN_DIMS

    r_sp, r_nb, r_an, r_mo = 0, POS_DIM, POS_DIM + ND, POS_DIM + 2 * ND

    # ---- branch layer-1: block-structured (IN_LANES, FUSED); noise lanes' rows stay 0
    w1 = jnp.zeros((IN_LANES, FUSED), f32)
    w1 = w1.at[r_sp:r_sp + POS_DIM, O_SP:O_SP + 64].set(sp_w1)
    w1 = w1.at[r_nb:r_nb + ND, O_NB:O_NB + 128].set(nb_w1)
    w1 = w1.at[r_an:r_an + ND, O_AN:O_AN + 128].set(an_w1)
    w1 = w1.at[r_mo:r_mo + POS_DIM, O_MO:O_MO + 32].set(mo_w1)

    b1 = jnp.zeros((FUSED,), f32)
    b1 = b1.at[O_SP:O_SP + 64].set(sp_b1).at[O_NB:O_NB + 128].set(nb_b1)
    b1 = b1.at[O_AN:O_AN + 128].set(an_b1).at[O_MO:O_MO + 32].set(mo_b1)

    # ---- branch layer-2 (block-diagonal, no nonlinearity after it) folded into
    #      backbone L1 in f32:  W' = W2 @ BBW1 , b' = bb_b1 + b2 @ BBW1, cast to bf16 once.
    w2 = jnp.zeros((FUSED, FUSED), f32)
    w2 = w2.at[O_SP:O_SP + 64, O_SP:O_SP + 64].set(sp_w2)
    w2 = w2.at[O_NB:O_NB + 128, O_NB:O_NB + 128].set(nb_w2)
    w2 = w2.at[O_AN:O_AN + 128, O_AN:O_AN + 128].set(an_w2)
    w2 = w2.at[O_MO:O_MO + 32, O_MO:O_MO + 32].set(mo_w2)

    b2 = jnp.zeros((FUSED,), f32)
    b2 = b2.at[O_SP:O_SP + 64].set(sp_b2).at[O_NB:O_NB + 128].set(nb_b2)
    b2 = b2.at[O_AN:O_AN + 128].set(an_b2).at[O_MO:O_MO + 32].set(mo_b2)

    bbw1_pad = jnp.zeros((FUSED, H0), f32).at[:REAL_FUSED, :].set(bb_w1)
    wf = w2 @ bbw1_pad                       # (FUSED, H0) folded weight (f32)
    bfold = bb_b1 + b2 @ bbw1_pad            # (H0,)       folded bias

    # ---- head: mu weight duplicated into output lanes [0:A] and [A:2A]
    headw = jnp.zeros((H1, OUT_LANES), f32)
    headw = headw.at[:, 0:A].set(mu_w).at[:, A:2 * A].set(mu_w)

    # ---- bias / constant slab (8, FUSED) f32
    std = jnp.exp(log_std)
    logp_c = jnp.sum(-log_std) - 0.5 * A * LOG2PI
    bias = jnp.zeros((8, FUSED), f32)
    bias = bias.at[0, :].set(b1)
    bias = bias.at[1, :H0].set(bfold)
    bias = bias.at[2, :H1].set(bb_b2)
    bias = bias.at[3, 0:A].set(mu_b).at[3, A:2 * A].set(mu_b)
    bias = bias.at[4, 0:A].set(std)                 # std for action = mu + std*noise
    bias = bias.at[5, 2 * A:3 * A].set(std)         # std packed into output lanes [2A:3A]
    bias = bias.at[5, 3 * A].set(logp_c)            # log-prob constant at output lane 3A

    return (w1.astype(bf16), wf.astype(bf16), bb_w2.astype(bf16),
            headw.astype(bf16), bias)


# --------------------------------------------------------------------------
# Pure-JAX f32 reference (mirrors the original module's use_attention=False path)
# --------------------------------------------------------------------------
def reference_forward(obs, noise, params):
    (sp_w1, sp_b1, sp_w2, sp_b2,
     nb_w1, nb_b1, nb_w2, nb_b2,
     an_w1, an_b1, an_w2, an_b2,
     mo_w1, mo_b1, mo_w2, mo_b2,
     bb_w1, bb_b1, bb_w2, bb_b2,
     mu_w, mu_b, log_std) = params

    def mlp2(h, w1, b1, w2, b2):
        return jnp.maximum(h @ w1 + b1, 0.0) @ w2 + b2

    sp = mlp2(obs[:, :POS_DIM], sp_w1, sp_b1, sp_w2, sp_b2)
    nb = mlp2(obs[:, POS_DIM:POS_DIM + ND], nb_w1, nb_b1, nb_w2, nb_b2)
    an = mlp2(obs[:, POS_DIM + ND:POS_DIM + 2 * ND], an_w1, an_b1, an_w2, an_b2)
    mo = mlp2(obs[:, -POS_DIM:], mo_w1, mo_b1, mo_w2, mo_b2)
    comb = jnp.concatenate([sp, nb, an, mo], axis=-1)
    h = jnp.maximum(comb @ bb_w1 + bb_b1, 0.0)
    h = jnp.maximum(h @ bb_w2 + bb_b2, 0.0)
    mu = jnp.tanh(h @ mu_w + mu_b)
    std = jnp.broadcast_to(jnp.exp(log_std), mu.shape)
    action = mu + std * noise
    logp = jnp.sum(-((action - mu) ** 2) / (2.0 * std * std) - log_std
                   - 0.5 * LOG2PI, axis=-1, keepdims=True)
    return action, logp, mu, std


if __name__ == "__main__":
    key = jax.random.PRNGKey(0)
    k_obs, k_noise, k_params = jax.random.split(key, 3)

    obs = jax.random.normal(k_obs, (BATCH, OBS_DIM), jnp.float32)
    noise = jax.random.normal(k_noise, (BATCH, ACTION_DIM), jnp.float32)
    params = init_params(k_params)
    packed = pack_params(params)

    out = optimized_actor_forward(obs, noise, packed)
    out = jax.block_until_ready(out)

    ref = reference_forward(obs, noise, params)
    # bf16 MXU + bf16 input path vs f32 reference -> bf16-level tolerance
    for got, want in zip(out, ref):
        np.testing.assert_allclose(np.asarray(got), np.asarray(want),
                                   rtol=5e-2, atol=5e-2)

    # TODO(synk): the use_attention=True branch (AttentionBlock) is shape-
    # inconsistent in the reference module (dim-3 tokens fed to Linear(128,.)
    # + 128-dim residual), so only the use_attention=False forward is implemented.
    print("KERNEL_OK")
</pallas_src>

<mosaic_0001>
module attributes {stable_mosaic.version = 11 : i64} {
  func.func @actor_kernel(%arg0: i32, %arg1: memref<8x128xbf16, #tpu.memory_space<vmem>>, %arg2: memref<128x384xbf16, #tpu.memory_space<vmem>>, %arg3: memref<384x256xbf16, #tpu.memory_space<vmem>>, %arg4: memref<256x256xbf16, #tpu.memory_space<vmem>>, %arg5: memref<256x128xbf16, #tpu.memory_space<vmem>>, %arg6: memref<8x384xf32, #tpu.memory_space<vmem>>, %arg7: memref<8x128xf32, #tpu.memory_space<vmem>>) attributes {dimension_semantics = [#tpu.dimension_semantics<parallel>], iteration_bounds = array<i64: 1>, scalar_prefetch = 0 : i64, scratch_operands = 0 : i64, tpu.core_type = #tpu.core_type<tc>, window_params = [{transform_indices = @transform_0, window_bounds = array<i64: 8, 128>}, {pipeline_mode = #tpu.pipeline_mode<synchronous>, transform_indices = @transform_1, window_bounds = array<i64: 128, 384>}, {pipeline_mode = #tpu.pipeline_mode<synchronous>, transform_indices = @transform_2, window_bounds = array<i64: 384, 256>}, {pipeline_mode = #tpu.pipeline_mode<synchronous>, transform_indices = @transform_3, window_bounds = array<i64: 256, 256>}, {pipeline_mode = #tpu.pipeline_mode<synchronous>, transform_indices = @transform_4, window_bounds = array<i64: 256, 128>}, {pipeline_mode = #tpu.pipeline_mode<synchronous>, transform_indices = @transform_5, window_bounds = array<i64: 8, 384>}, {transform_indices = @transform_6, window_bounds = array<i64: 8, 128>}]} {
    %c0 = arith.constant 0 : index
    %c0_0 = arith.constant 0 : index
    %0 = vector.load %arg6[%c0, %c0_0] : memref<8x384xf32, #tpu.memory_space<vmem>>, vector<8x384xf32>
    %1 = vector.extract_strided_slice %0 {offsets = [0, 0], sizes = [1, 384], strides = [1, 1]} : vector<8x384xf32> to vector<1x384xf32>
    %2 = vector.extract_strided_slice %0 {offsets = [1, 0], sizes = [1, 256], strides = [1, 1]} : vector<8x384xf32> to vector<1x256xf32>
    %3 = vector.extract_strided_slice %0 {offsets = [2, 0], sizes = [1, 256], strides = [1, 1]} : vector<8x384xf32> to vector<1x256xf32>
    %4 = vector.extract_strided_slice %0 {offsets = [3, 0], sizes = [1, 128], strides = [1, 1]} : vector<8x384xf32> to vector<1x128xf32>
    %5 = vector.extract_strided_slice %0 {offsets = [4, 0], sizes = [1, 128], strides = [1, 1]} : vector<8x384xf32> to vector<1x128xf32>
    %6 = vector.extract_strided_slice %0 {offsets = [5, 0], sizes = [1, 128], strides = [1, 1]} : vector<8x384xf32> to vector<1x128xf32>
    %c0_1 = arith.constant 0 : index
    %c0_2 = arith.constant 0 : index
    %7 = vector.load %arg1[%c0_1, %c0_2] : memref<8x128xbf16, #tpu.memory_space<vmem>>, vector<8x128xbf16>
    %c0_3 = arith.constant 0 : index
    %c0_4 = arith.constant 0 : index
    %8 = vector.load %arg2[%c0_3, %c0_4] : memref<128x384xbf16, #tpu.memory_space<vmem>>, vector<128x384xbf16>
    %cst = arith.constant dense<0.000000e+00> : vector<8x384xf32>
    %9 = tpu.matmul %7, %8, %cst {dimension_numbers = #tpu.dot_dimension_numbers<[1], [0], [0], [1], [0, 0, 1, 1], [], []>} : vector<8x128xbf16>, vector<128x384xbf16>, vector<8x384xf32> -> vector<8x384xf32>
    %10 = vector.broadcast %1 : vector<1x384xf32> to vector<8x384xf32>
    %11 = arith.addf %9, %10 : vector<8x384xf32>
    %cst_5 = arith.constant 0.000000e+00 : f32
    %12 = vector.broadcast %cst_5 : f32 to vector<8x384xf32>
    %13 = arith.maximumf %11, %12 : vector<8x384xf32>
    %14 = arith.truncf %13 : vector<8x384xf32> to vector<8x384xbf16>
    %c0_6 = arith.constant 0 : index
    %c0_7 = arith.constant 0 : index
    %15 = vector.load %arg3[%c0_6, %c0_7] : memref<384x256xbf16, #tpu.memory_space<vmem>>, vector<384x256xbf16>
    %cst_8 = arith.constant dense<0.000000e+00> : vector<8x256xf32>
    %16 = tpu.matmul %14, %15, %cst_8 {dimension_numbers = #tpu.dot_dimension_numbers<[1], [0], [0], [1], [0, 0, 1, 1], [], []>} : vector<8x384xbf16>, vector<384x256xbf16>, vector<8x256xf32> -> vector<8x256xf32>
    %17 = vector.broadcast %2 : vector<1x256xf32> to vector<8x256xf32>
    %18 = arith.addf %16, %17 : vector<8x256xf32>
    %cst_9 = arith.constant 0.000000e+00 : f32
    %19 = vector.broadcast %cst_9 : f32 to vector<8x256xf32>
    %20 = arith.maximumf %18, %19 : vector<8x256xf32>
    %21 = arith.truncf %20 : vector<8x256xf32> to vector<8x256xbf16>
    %c0_10 = arith.constant 0 : index
    %c0_11 = arith.constant 0 : index
    %22 = vector.load %arg4[%c0_10, %c0_11] : memref<256x256xbf16, #tpu.memory_space<vmem>>, vector<256x256xbf16>
    %cst_12 = arith.constant dense<0.000000e+00> : vector<8x256xf32>
    %23 = tpu.matmul %21, %22, %cst_12 {dimension_numbers = #tpu.dot_dimension_numbers<[1], [0], [0], [1], [0, 0, 1, 1], [], []>} : vector<8x256xbf16>, vector<256x256xbf16>, vector<8x256xf32> -> vector<8x256xf32>
    %24 = vector.broadcast %3 : vector<1x256xf32> to vector<8x256xf32>
    %25 = arith.addf %23, %24 : vector<8x256xf32>
    %cst_13 = arith.constant 0.000000e+00 : f32
    %26 = vector.broadcast %cst_13 : f32 to vector<8x256xf32>
    %27 = arith.maximumf %25, %26 : vector<8x256xf32>
    %28 = arith.truncf %27 : vector<8x256xf32> to vector<8x256xbf16>
    %c0_14 = arith.constant 0 : index
    %c0_15 = arith.constant 0 : index
    %29 = vector.load %arg5[%c0_14, %c0_15] : memref<256x128xbf16, #tpu.memory_space<vmem>>, vector<256x128xbf16>
    %cst_16 = arith.constant dense<0.000000e+00> : vector<8x128xf32>
    %30 = tpu.matmul %28, %29, %cst_16 {dimension_numbers = #tpu.dot_dimension_numbers<[1], [0], [0], [1], [0, 0, 1, 1], [], []>} : vector<8x256xbf16>, vector<256x128xbf16>, vector<8x128xf32> -> vector<8x128xf32>
    %31 = vector.broadcast %4 : vector<1x128xf32> to vector<8x128xf32>
    %32 = arith.addf %30, %31 : vector<8x128xf32>
    %33 = math.tanh %32 : vector<8x128xf32>
    %34 = tpu.iota {dimensions = array<i32: 1>} : vector<8x128xi32>
    %35 = arith.extf %7 : vector<8x128xbf16> to vector<8x128xf32>
    %c64_i32 = arith.constant 64 : i32
    %36 = tpu.dynamic_rotate %35 by %c64_i32 dim 1 : vector<8x128xf32>, i32 -> vector<8x128xf32>
    %c4_i32 = arith.constant 4 : i32
    %37 = vector.broadcast %c4_i32 : i32 to vector<8x128xi32>
    %38 = arith.cmpi slt, %34, %37 : vector<8x128xi32>
    %cst_17 = arith.constant 0.000000e+00 : f32
    %39 = vector.broadcast %cst_17 : f32 to vector<8x128xf32>
    %40 = arith.select %38, %36, %39 : vector<8x128xi1>, vector<8x128xf32>
    %41 = arith.mulf %40, %40 : vector<8x128xf32>
    %cst_18 = arith.constant dense<0.000000e+00> : vector<8xf32>
    %42 = vector.multi_reduction <add>, %41, %cst_18 [1] : vector<8x128xf32> to vector<8xf32>
    %43 = vector.shape_cast %42 : vector<8xf32> to vector<8x1xf32>
    %cst_19 = arith.constant -5.000000e-01 : f32
    %44 = vector.broadcast %cst_19 : f32 to vector<8x1xf32>
    %45 = arith.mulf %44, %43 : vector<8x1xf32>
    %46 = vector.broadcast %5 : vector<1x128xf32> to vector<8x128xf32>
    %47 = arith.mulf %46, %40 : vector<8x128xf32>
    %48 = arith.addf %33, %47 : vector<8x128xf32>
    %49 = vector.broadcast %6 : vector<1x128xf32> to vector<8x128xf32>
    %50 = arith.addf %48, %49 : vector<8x128xf32>
    %c12_i32 = arith.constant 12 : i32
    %51 = vector.broadcast %c12_i32 : i32 to vector<8x128xi32>
    %52 = arith.cmpi eq, %34, %51 : vector<8x128xi32>
    %cst_20 = arith.constant 0.000000e+00 : f32
    %53 = vector.shape_cast %45 : vector<8x1xf32> to vector<8x1xf32>
    %54 = vector.broadcast %53 : vector<8x1xf32> to vector<8x128xf32>
    %55 = vector.broadcast %cst_20 : f32 to vector<8x128xf32>
    %56 = arith.select %52, %54, %55 : vector<8x128xi1>, vector<8x128xf32>
    %57 = arith.addf %50, %56 : vector<8x128xf32>
    %c0_21 = arith.constant 0 : index
    %c0_22 = arith.constant 0 : index
    %58 = vector.load %arg7[%c0_21, %c0_22] : memref<8x128xf32, #tpu.memory_space<vmem>>, vector<8x128xf32>
    tpu.vector_store %arg7[%c0_21, %c0_22], %57 {strides = array<i32>} : memref<8x128xf32, #tpu.memory_space<vmem>>, vector<8x128xf32>,
    return
  }
  func.func @transform_0(%arg0: i32) -> (i32, i32) {
    %c0_i32 = arith.constant 0 : i32
    %c0_i32_0 = arith.constant 0 : i32
    return %arg0, %c0_i32 : i32, i32
  }
  func.func @transform_1(%arg0: i32) -> (i32, i32) {
    %c0_i32 = arith.constant 0 : i32
    %c0_i32_0 = arith.constant 0 : i32
    %c0_i32_1 = arith.constant 0 : i32
    return %c0_i32, %c0_i32_0 : i32, i32
  }
  func.func @transform_2(%arg0: i32) -> (i32, i32) {
    %c0_i32 = arith.constant 0 : i32
    %c0_i32_0 = arith.constant 0 : i32
    %c0_i32_1 = arith.constant 0 : i32
    return %c0_i32, %c0_i32_0 : i32, i32
  }
  func.func @transform_3(%arg0: i32) -> (i32, i32) {
    %c0_i32 = arith.constant 0 : i32
    %c0_i32_0 = arith.constant 0 : i32
    %c0_i32_1 = arith.constant 0 : i32
    return %c0_i32, %c0_i32_0 : i32, i32
  }
  func.func @transform_4(%arg0: i32) -> (i32, i32) {
    %c0_i32 = arith.constant 0 : i32
    %c0_i32_0 = arith.constant 0 : i32
    %c0_i32_1 = arith.constant 0 : i32
    return %c0_i32, %c0_i32_0 : i32, i32
  }
  func.func @transform_5(%arg0: i32) -> (i32, i32) {
    %c0_i32 = arith.constant 0 : i32
    %c0_i32_0 = arith.constant 0 : i32
    %c0_i32_1 = arith.constant 0 : i32
    return %c0_i32, %c0_i32_0 : i32, i32
  }
  func.func @transform_6(%arg0: i32) -> (i32, i32) {
    %c0_i32 = arith.constant 0 : i32
    %c0_i32_0 = arith.constant 0 : i32
    return %arg0, %c0_i32 : i32, i32
  }
}

</mosaic_0001>

<llo_original>
// kernel: tpu_custom_call.1
$region0: #{tpu_custom_call.1}
  #allocation0 [shape = 'u32[]', space=smem, size = 0x4, offset = 0x4, fixed_abs, tag = 'smem constant byte address 0x4 - core index']
  #allocation1 [shape = 'u32[144,128]{1,0:T(1,128)}', space=vmem, size = 0x12000, scoped, tag = 'internal scratch']
  %s0 = inlined_call_operand.hbm [shape: bf16[8,128], index: 0, kind: input, shape index: {}]
  %s1 = inlined_call_operand.hbm [shape: bf16[128,384], index: 1, kind: input, shape index: {}]
  %s2 = inlined_call_operand.hbm [shape: bf16[384,256], index: 2, kind: input, shape index: {}]
  %s3 = inlined_call_operand.hbm [shape: bf16[256,256], index: 3, kind: input, shape index: {}]
  %s4 = inlined_call_operand.hbm [shape: bf16[256,128], index: 4, kind: input, shape index: {}]
  %s5 = inlined_call_operand.hbm [shape: f32[8,384], index: 5, kind: input, shape index: {}]
  %s6 = inlined_call_operand.hbm [shape: f32[8,128], index: 6, kind: output, shape index: {}]
  %s7 = sld [smem:[#allocation0]]
  $region58: #{tpu_custom_call.1} parent=0
    _
  %s9 = ssub.s32 1, %s7
  %s10 = scalar_select 0, %s9, %s7
  $region1: #{tpu_custom_call.1} parent=0
    #allocation2 [shape = 'u8[2048]{0}', space=vmem, size = 0x800, scoped, tag = 'input window, operand 0, single buffered']
    #allocation3 [shape = 's32[1]{0}', space=sflag, size = 0x4, scoped, tag = 'scoped memory for tpu_custom_call.1']
    #allocation4 [shape = 's32[1]{0}', space=sflag, size = 0x4, scoped, tag = 'scoped memory for tpu_custom_call.1']
    #allocation5 [shape = 'u8[98304]{0}', space=vmem, size = 0x18000, scoped, tag = 'input window, operand 1, single buffered']
    #allocation6 [shape = 's32[1]{0}', space=sflag, size = 0x4, scoped, tag = 'scoped memory for tpu_custom_call.1']
    #allocation7 [shape = 'u8[196608]{0}', space=vmem, size = 0x30000, scoped, tag = 'input window, operand 2, single buffered']
    #allocation8 [shape = 'u8[131072]{0}', space=vmem, size = 0x20000, scoped, tag = 'input window, operand 3, single buffered']
    #allocation9 [shape = 's32[1]{0}', space=sflag, size = 0x4, scoped, tag = 'scoped memory for tpu_custom_call.1']
    #allocation10 [shape = 'u8[65536]{0}', space=vmem, size = 0x10000, scoped, tag = 'input window, operand 4, single buffered']
    #allocation11 [shape = 'u8[12288]{0}', space=vmem, size = 0x3000, scoped, tag = 'input window, operand 5, single buffered']
    #allocation12 [shape = 's32[1]{0}', space=sflag, size = 0x4, scoped, tag = 'scoped memory for tpu_custom_call.1']
    #allocation13 [shape = 'u8[4096]{0}', space=vmem, size = 0x1000, scoped, tag = 'output window, operand 0, single buffered']
    %11 = vsyncpa [#allocation3], 0
    %12 = vsyncpa [#allocation6], 0
    %13 = vsyncpa [#allocation9], 0
    %14 = vsyncpa [#allocation12], 0
    %15 = vsyncpa [#allocation4], 0
    // Predicated region
    $region2: #{tpu_custom_call.1} parent=1 // pred_check
      _
    $region3: #{tpu_custom_call.1} parent=1 // pred_check_branch
      %17 = sbr.rel (0) target = $region5
    $region4: #{tpu_custom_call.1} parent=1 // pred_region
      %s19 = ssub.s32 64, 64
      %20 = vsyncadd [#allocation3], %s19
      %s22 = sshll.u32 [#allocation2], 4
      %s23 = int_to_ptr.vmem [resolvable:$true] %s22
      %25 = dma.hbm_to_vmem [thread:$0]  %s0, 64, %s23, [#allocation3]
    $region5: #{tpu_custom_call.1} parent=1 // pred_fallthru
      _
    // Predicated region
    $region6: #{tpu_custom_call.1} parent=1 // pred_check
      _
    $region7: #{tpu_custom_call.1} parent=1 // pred_check_branch
      %27 = sbr.rel (0) target = $region9
    $region8: #{tpu_custom_call.1} parent=1 // pred_region
      %s29 = ssub.s32 3072, 3072
      %30 = vsyncadd [#allocation6], %s29
      %s31 = sshll.u32 [#allocation5], 4
      %s32 = int_to_ptr.vmem [resolvable:$true] %s31
      %37 = dma.hbm_to_vmem [thread:$0]  %s1, 3072, %s32, [#allocation6], 192, 192, 12
    $region9: #{tpu_custom_call.1} parent=1 // pred_fallthru
      _
    // Predicated region
    $region10: #{tpu_custom_call.1} parent=1 // pred_check
      _
    $region11: #{tpu_custom_call.1} parent=1 // pred_check_branch
      %39 = sbr.rel (0) target = $region13
    $region12: #{tpu_custom_call.1} parent=1 // pred_region
      %s41 = ssub.s32 6144, 6144
      %42 = vsyncadd [#allocation6], %s41
      %s43 = sshll.u32 [#allocation7], 4
      %s44 = int_to_ptr.vmem [resolvable:$true] %s43
      %49 = dma.hbm_to_vmem [thread:$0]  %s2, 6144, %s44, [#allocation6], 128, 128, 8
    $region13: #{tpu_custom_call.1} parent=1 // pred_fallthru
      _
    // Predicated region
    $region14: #{tpu_custom_call.1} parent=1 // pred_check
      _
    $region15: #{tpu_custom_call.1} parent=1 // pred_check_branch
      %51 = sbr.rel (0) target = $region17
    $region16: #{tpu_custom_call.1} parent=1 // pred_region
      %s53 = ssub.s32 4096, 4096
      %54 = vsyncadd [#allocation9], %s53
      %s55 = sshll.u32 [#allocation8], 4
      %s56 = int_to_ptr.vmem [resolvable:$true] %s55
      %61 = dma.hbm_to_vmem [thread:$0]  %s3, 4096, %s56, [#allocation9], 128, 128, 8
    $region17: #{tpu_custom_call.1} parent=1 // pred_fallthru
      _
    // Predicated region
    $region18: #{tpu_custom_call.1} parent=1 // pred_check
      _
    $region19: #{tpu_custom_call.1} parent=1 // pred_check_branch
      %63 = sbr.rel (0) target = $region21
    $region20: #{tpu_custom_call.1} parent=1 // pred_region
      %s65 = ssub.s32 2048, 2048
      %66 = vsyncadd [#allocation9], %s65
      %s67 = sshll.u32 [#allocation10], 4
      %s68 = int_to_ptr.vmem [resolvable:$true] %s67
      %73 = dma.hbm_to_vmem [thread:$0]  %s4, 2048, %s68, [#allocation9], 64, 64, 4
    $region21: #{tpu_custom_call.1} parent=1 // pred_fallthru
      _
    // Predicated region
    $region22: #{tpu_custom_call.1} parent=1 // pred_check
      _
    $region23: #{tpu_custom_call.1} parent=1 // pred_check_branch
      %75 = sbr.rel (0) target = $region25
    $region24: #{tpu_custom_call.1} parent=1 // pred_region
      %s77 = ssub.s32 384, 384
      %78 = vsyncadd [#allocation12], %s77
      %s80 = sshll.u32 [#allocation11], 4
      %s81 = int_to_ptr.vmem [resolvable:$true] %s80
      %83 = dma.hbm_to_vmem [thread:$0]  %s5, 384, %s81, [#allocation12]
    $region25: #{tpu_custom_call.1} parent=1 // pred_fallthru
      _
    // Predicated region
    $region26: #{tpu_custom_call.1} parent=1 // pred_check
      _
    $region27: #{tpu_custom_call.1} parent=1 // pred_check_branch
      %85 = sbr.rel (0) target = $region29
    $region28: #{tpu_custom_call.1} parent=1 // pred_region
      %86 = dma.done [#allocation3], 64
    $region29: #{tpu_custom_call.1} parent=1 // pred_fallthru
      _
    // Predicated region
    $region30: #{tpu_custom_call.1} parent=1 // pred_check
      _
    $region31: #{tpu_custom_call.1} parent=1 // pred_check_branch
      %88 = sbr.rel (0) target = $region33
    $region32: #{tpu_custom_call.1} parent=1 // pred_region
      %89 = dma.done [#allocation6], 3072
    $region33: #{tpu_custom_call.1} parent=1 // pred_fallthru
      _
    // Predicated region
    $region34: #{tpu_custom_call.1} parent=1 // pred_check
      _
    $region35: #{tpu_custom_call.1} parent=1 // pred_check_branch
      %91 = sbr.rel (0) target = $region37
    $region36: #{tpu_custom_call.1} parent=1 // pred_region
      %92 = dma.done [#allocation6], 6144
    $region37: #{tpu_custom_call.1} parent=1 // pred_fallthru
      _
    // Predicated region
    $region38: #{tpu_custom_call.1} parent=1 // pred_check
      _
    $region39: #{tpu_custom_call.1} parent=1 // pred_check_branch
      %94 = sbr.rel (0) target = $region41
    $region40: #{tpu_custom_call.1} parent=1 // pred_region
      %95 = dma.done [#allocation9], 4096
    $region41: #{tpu_custom_call.1} parent=1 // pred_fallthru
      _
    // Predicated region
    $region42: #{tpu_custom_call.1} parent=1 // pred_check
      _
    $region43: #{tpu_custom_call.1} parent=1 // pred_check_branch
      %97 = sbr.rel (0) target = $region45
    $region44: #{tpu_custom_call.1} parent=1 // pred_region
      %98 = dma.done [#allocation9], 2048
    $region45: #{tpu_custom_call.1} parent=1 // pred_fallthru
      _
    // Predicated region
    $region46: #{tpu_custom_call.1} parent=1 // pred_check
      _
    $region47: #{tpu_custom_call.1} parent=1 // pred_check_branch
      %100 = sbr.rel (0) target = $region49
    $region48: #{tpu_custom_call.1} parent=1 // pred_region
      %101 = dma.done [#allocation12], 384
    $region49: #{tpu_custom_call.1} parent=1 // pred_fallthru
      _
    %v103 = vld [vmem:[#allocation11] sm:$0xff]
    %v104 = vld [vmem:[#allocation11 + $0x8] sm:$0xff]
    %v105 = vld [vmem:[#allocation11 + $0x10] sm:$0xff]
    %v106 = vld [vmem:[#allocation2] sm:$0xf]
    %v107 = vld [vmem:[#allocation5] sm:$0xff]
    %v108 = vld [vmem:[#allocation5 + $0x8] sm:$0xf]
    %v109 = vld [vmem:[#allocation5 + $0xc] sm:$0xff]
    %v110 = vld [vmem:[#allocation5 + $0x14] sm:$0xf]
    %v111 = vld [vmem:[#allocation5 + $0x18] sm:$0xff]
    %v112 = vld [vmem:[#allocation5 + $0x20] sm:$0xf]
    %v113 = vld [vmem:[#allocation5 + $0x24] sm:$0xff]
    %v114 = vld [vmem:[#allocation5 + $0x2c] sm:$0xf]
    %v115 = vld [vmem:[#allocation5 + $0x30] sm:$0xff]
    %v116 = vld [vmem:[#allocation5 + $0x38] sm:$0xf]
    %v117 = vld [vmem:[#allocation5 + $0x3c] sm:$0xff]
    %v118 = vld [vmem:[#allocation5 + $0x44] sm:$0xf]
    %v119 = vld [vmem:[#allocation5 + $0x48] sm:$0xff]
    %v120 = vld [vmem:[#allocation5 + $0x50] sm:$0xf]
    %v121 = vld [vmem:[#allocation5 + $0x54] sm:$0xff]
    %v122 = vld [vmem:[#allocation5 + $0x5c] sm:$0xf]
    %v123 = vld [vmem:[#allocation5 + $0x60] sm:$0xff]
    %v124 = vld [vmem:[#allocation5 + $0x68] sm:$0xf]
    %v125 = vld [vmem:[#allocation5 + $0x6c] sm:$0xff]
    %v126 = vld [vmem:[#allocation5 + $0x74] sm:$0xf]
    %v127 = vld [vmem:[#allocation5 + $0x78] sm:$0xff]
    %v128 = vld [vmem:[#allocation5 + $0x80] sm:$0xf]
    %v129 = vld [vmem:[#allocation5 + $0x84] sm:$0xff]
    %v130 = vld [vmem:[#allocation5 + $0x8c] sm:$0xf]
    %v131 = vld [vmem:[#allocation5 + $0x90] sm:$0xff]
    %v132 = vld [vmem:[#allocation5 + $0x98] sm:$0xf]
    %v133 = vld [vmem:[#allocation5 + $0x9c] sm:$0xff]
    %v134 = vld [vmem:[#allocation5 + $0xa4] sm:$0xf]
    %v135 = vld [vmem:[#allocation5 + $0xa8] sm:$0xff]
    %v136 = vld [vmem:[#allocation5 + $0xb0] sm:$0xf]
    %v137 = vld [vmem:[#allocation5 + $0xb4] sm:$0xff]
    %v138 = vld [vmem:[#allocation5 + $0xbc] sm:$0xf]
    %v139 = vlaneseq
    %v140 = vshrl.u32 %v139, 7
    %v141 = vsub.s32 0, %v140
    %v142 = vrot.slane %v103, %v141
    %v143 = vlaneseq
    %v144 = vshrl.u32 %v143, 7
    %v145 = vsub.s32 0, %v144
    %v146 = vrot.slane %v104, %v145
    %v147 = vlaneseq
    %v148 = vshrl.u32 %v147, 7
    %v149 = vsub.s32 0, %v148
    %v150 = vrot.slane %v105, %v149
    %v183 = vunpack.c.l.b16 %v107
    %v184 = vunpack.c.h.b16 %v107
    %v185 = vunpack.c.l.b16 %v108
    %v186 = vunpack.c.l.b16 %v109
    %v187 = vunpack.c.h.b16 %v109
    %v188 = vunpack.c.l.b16 %v110
    %v189 = vunpack.c.l.b16 %v111
    %v190 = vunpack.c.h.b16 %v111
    %v191 = vunpack.c.l.b16 %v112
    %v192 = vunpack.c.l.b16 %v113
    %v193 = vunpack.c.h.b16 %v113
    %v194 = vunpack.c.l.b16 %v114
    %v195 = vunpack.c.l.b16 %v115
    %v196 = vunpack.c.h.b16 %v115
    %v197 = vunpack.c.l.b16 %v116
    %v198 = vunpack.c.l.b16 %v117
    %v199 = vunpack.c.h.b16 %v117
    %v200 = vunpack.c.l.b16 %v118
    %v201 = vunpack.c.l.b16 %v119
    %v202 = vunpack.c.h.b16 %v119
    %v203 = vunpack.c.l.b16 %v120
    %v204 = vunpack.c.l.b16 %v121
    %v205 = vunpack.c.h.b16 %v121
    %v206 = vunpack.c.l.b16 %v122
    %v207 = vunpack.c.l.b16 %v123
    %v208 = vunpack.c.h.b16 %v123
    %v209 = vunpack.c.l.b16 %v124
    %v210 = vunpack.c.l.b16 %v125
    %v211 = vunpack.c.h.b16 %v125
    %v212 = vunpack.c.l.b16 %v126
    %v213 = vunpack.c.l.b16 %v127
    %v214 = vunpack.c.h.b16 %v127
    %v215 = vunpack.c.l.b16 %v128
    %v216 = vunpack.c.l.b16 %v129
    %v217 = vunpack.c.h.b16 %v129
    %v218 = vunpack.c.l.b16 %v130
    %v219 = vunpack.c.l.b16 %v131
    %v220 = vunpack.c.h.b16 %v131
    %v221 = vunpack.c.l.b16 %v132
    %v222 = vunpack.c.l.b16 %v133
    %v223 = vunpack.c.h.b16 %v133
    %v224 = vunpack.c.l.b16 %v134
    %v225 = vunpack.c.l.b16 %v135
    %v226 = vunpack.c.h.b16 %v135
    %v227 = vunpack.c.l.b16 %v136
    %v228 = vunpack.c.l.b16 %v137
    %v229 = vunpack.c.h.b16 %v137
    %v230 = vunpack.c.l.b16 %v138
    %v231 = vpack.c.b16 %v186, %v183
    %v232 = vpack.c.b16 %v187, %v184
    %v233 = vpack.c.b16 %v188, %v185
    %v234 = vpack.c.b16 %v192, %v189
    %v235 = vpack.c.b16 %v193, %v190
    %v236 = vpack.c.b16 %v194, %v191
    %v237 = vpack.c.b16 %v198, %v195
    %v238 = vpack.c.b16 %v199, %v196
    %v239 = vpack.c.b16 %v200, %v197
    %v240 = vpack.c.b16 %v204, %v201
    %v241 = vpack.c.b16 %v205, %v202
    %v242 = vpack.c.b16 %v206, %v203
    %v243 = vpack.c.b16 %v210, %v207
    %v244 = vpack.c.b16 %v211, %v208
    %v245 = vpack.c.b16 %v212, %v209
    %v246 = vpack.c.b16 %v216, %v213
    %v247 = vpack.c.b16 %v217, %v214
    %v248 = vpack.c.b16 %v218, %v215
    %v249 = vpack.c.b16 %v222, %v219
    %v250 = vpack.c.b16 %v223, %v220
    %v251 = vpack.c.b16 %v224, %v221
    %v252 = vpack.c.b16 %v228, %v225
    %v253 = vpack.c.b16 %v229, %v226
    %v254 = vpack.c.b16 %v230, %v227
    %279 = vmatprep.subr.bf16.mxu0 %v232
    %280 = vmatpush1.bf16.msra.mxu0 %v231
    %281 = vmatprep.subr.bf16.mxu0 %v235
    %282 = vmatpush1.bf16.msra.mxu0 %v234
    %283 = vmatprep.subr.bf16.mxu0 %v238
    %284 = vmatpush1.bf16.msra.mxu0 %v237
    %285 = vmatprep.subr.bf16.mxu0 %v241
    %286 = vmatpush1.bf16.msra.mxu0 %v240
    %287 = vmatprep.subr.bf16.mxu0 %v244
    %288 = vmatpush1.bf16.msra.mxu0 %v243
    %289 = vmatprep.subr.bf16.mxu0 %v247
    %290 = vmatpush1.bf16.msra.mxu0 %v246
    %291 = vmatprep.subr.bf16.mxu0 %v250
    %292 = vmatpush1.bf16.msra.mxu0 %v249
    %293 = vmatprep.subr.bf16.mxu0 %v253
    %294 = vmatpush1.bf16.msra.mxu0 %v252
    %295 = vmatprep.subr.bf16.mxu0 0
    %296 = vmatpush1.bf16.msra.mxu0 0
    %297 = vmatprep.subr.bf16.mxu0 0
    %298 = vmatpush1.bf16.msra.mxu0 0
    %299 = vmatprep.subr.bf16.mxu0 0
    %300 = vmatpush1.bf16.msra.mxu0 0
    %301 = vmatprep.subr.bf16.mxu0 0
    %302 = vmatpush1.bf16.msra.mxu0 0
    %303 = vmatprep.subr.bf16.mxu0 0
    %304 = vmatpush1.bf16.msra.mxu0 0
    %305 = vmatprep.subr.bf16.mxu0 0
    %306 = vmatpush1.bf16.msra.mxu0 0
    %307 = vmatprep.subr.bf16.mxu0 0
    %308 = vmatpush1.bf16.msra.mxu0 0
    %309 = vmatprep.subr.bf16.mxu0 0
    %310 = vmatpush1.bf16.msra.mxu0 0
    %311 = vmatprep.mubr.bf16.mxu0 0
    %312 = vmatmul.mubr.bf16.gmra.mrb[0].mxu0 %v106
    %v313 = vpop.f32.mrb[0].mxu0
    %v314 = vadd.f32 %v142, %v313
    %v315 = vpop.f32.mrb[0].mxu0
    %v316 = vadd.f32 %v146, %v315
    %v317 = vpop.f32.mrb[0].mxu0
    %v318 = vpop.f32.mrb[0].mxu0
    %319 = vdwg.mxu0
    %320 = vmatprep.subr.bf16.mxu0 0
    %321 = vmatpush1.bf16.msra.mxu0 %v233
    %322 = vmatprep.subr.bf16.mxu0 0
    %323 = vmatpush1.bf16.msra.mxu0 %v236
    %324 = vmatprep.subr.bf16.mxu0 0
    %325 = vmatpush1.bf16.msra.mxu0 %v239
    %326 = vmatprep.subr.bf16.mxu0 0
    %327 = vmatpush1.bf16.msra.mxu0 %v242
    %328 = vmatprep.subr.bf16.mxu0 0
    %329 = vmatpush1.bf16.msra.mxu0 %v245
    %330 = vmatprep.subr.bf16.mxu0 0
    %331 = vmatpush1.bf16.msra.mxu0 %v248
    %332 = vmatprep.subr.bf16.mxu0 0
    %333 = vmatpush1.bf16.msra.mxu0 %v251
    %334 = vmatprep.subr.bf16.mxu0 0
    %335 = vmatpush1.bf16.msra.mxu0 %v254
    %336 = vmatprep.subr.bf16.mxu0 0
    %337 = vmatpush1.bf16.msra.mxu0 0
    %338 = vmatprep.subr.bf16.mxu0 0
    %339 = vmatpush1.bf16.msra.mxu0 0
    %340 = vmatprep.subr.bf16.mxu0 0
    %341 = vmatpush1.bf16.msra.mxu0 0
    %342 = vmatprep.subr.bf16.mxu0 0
    %343 = vmatpush1.bf16.msra.mxu0 0
    %344 = vmatprep.subr.bf16.mxu0 0
    %345 = vmatpush1.bf16.msra.mxu0 0
    %346 = vmatprep.subr.bf16.mxu0 0
    %347 = vmatpush1.bf16.msra.mxu0 0
    %348 = vmatprep.subr.bf16.mxu0 0
    %349 = vmatpush1.bf16.msra.mxu0 0
    %350 = vmatprep.subr.bf16.mxu0 0
    %351 = vmatpush1.bf16.msra.mxu0 0
    %352 = vmatprep.mubr.bf16.mxu0 0
    %353 = vmatmul.mubr.bf16.gmra.mrb[0].mxu0 %v106
    %v354 = vpop.f32.mrb[0].mxu0
    %v355 = vadd.f32 %v150, %v354
    %v356 = vpop.f32.mrb[0].mxu0
    %v357 = vpop.f32.mrb[0].mxu0
    %v358 = vpop.f32.mrb[0].mxu0
    %359 = vdwg.mxu0
    %v360 = vmax.f32 %v314, 0.0
    %v361 = vmax.f32 %v316, 0.0
    %v362 = vmax.f32 %v355, 0.0
    %v363 = vpack.c.bf16 %v360, %v360
    %v364 = vpack.c.bf16 %v361, %v361
    %v365 = vpack.c.bf16 %v362, %v362
    %v366 = vld [vmem:[#allocation7] sm:$0xff]
    %v367 = vld [vmem:[#allocation7 + $0x8] sm:$0xff]
    %v368 = vld [vmem:[#allocation7 + $0x10] sm:$0xff]
    %v369 = vld [vmem:[#allocation7 + $0x18] sm:$0xff]
    %v370 = vld [vmem:[#allocation7 + $0x20] sm:$0xff]
    %v371 = vld [vmem:[#allocation7 + $0x28] sm:$0xff]
    %v372 = vld [vmem:[#allocation7 + $0x30] sm:$0xff]
    %v373 = vld [vmem:[#allocation7 + $0x38] sm:$0xff]
    %v374 = vld [vmem:[#allocation7 + $0x40] sm:$0xff]
    %v375 = vld [vmem:[#allocation7 + $0x48] sm:$0xff]
    %v376 = vld [vmem:[#allocation7 + $0x50] sm:$0xff]
    %v377 = vld [vmem:[#allocation7 + $0x58] sm:$0xff]
    %v378 = vld [vmem:[#allocation7 + $0x60] sm:$0xff]
    %v379 = vld [vmem:[#allocation7 + $0x68] sm:$0xff]
    %v380 = vld [vmem:[#allocation7 + $0x70] sm:$0xff]
    %v381 = vld [vmem:[#allocation7 + $0x78] sm:$0xff]
    %v382 = vld [vmem:[#allocation7 + $0x80] sm:$0xff]
    %v383 = vld [vmem:[#allocation7 + $0x88] sm:$0xff]
    %v384 = vld [vmem:[#allocation7 + $0x90] sm:$0xff]
    %v385 = vld [vmem:[#allocation7 + $0x98] sm:$0xff]
    %v386 = vld [vmem:[#allocation7 + $0xa0] sm:$0xff]
    %v387 = vld [vmem:[#allocation7 + $0xa8] sm:$0xff]
    %v388 = vld [vmem:[#allocation7 + $0xb0] sm:$0xff]
    %v389 = vld [vmem:[#allocation7 + $0xb8] sm:$0xff]
    %v390 = vld [vmem:[#allocation7 + $0xc0] sm:$0xff]
    %v391 = vld [vmem:[#allocation7 + $0xc8] sm:$0xff]
    %v392 = vld [vmem:[#allocation7 + $0xd0] sm:$0xff]
    %v393 = vld [vmem:[#allocation7 + $0xd8] sm:$0xff]
    %v394 = vld [vmem:[#allocation7 + $0xe0] sm:$0xff]
    %v395 = vld [vmem:[#allocation7 + $0xe8] sm:$0xff]
    %v396 = vld [vmem:[#allocation7 + $0xf0] sm:$0xff]
    %v397 = vld [vmem:[#allocation7 + $0xf8] sm:$0xff]
    %v398 = vld [vmem:[#allocation7 + $0x100] sm:$0xff]
    %v399 = vld [vmem:[#allocation7 + $0x108] sm:$0xff]
    %v400 = vld [vmem:[#allocation7 + $0x110] sm:$0xff]
    %v401 = vld [vmem:[#allocation7 + $0x118] sm:$0xff]
    %v402 = vld [vmem:[#allocation7 + $0x120] sm:$0xff]
    %v403 = vld [vmem:[#allocation7 + $0x128] sm:$0xff]
    %v404 = vld [vmem:[#allocation7 + $0x130] sm:$0xff]
    %v405 = vld [vmem:[#allocation7 + $0x138] sm:$0xff]
    %v406 = vld [vmem:[#allocation7 + $0x140] sm:$0xff]
    %v407 = vld [vmem:[#allocation7 + $0x148] sm:$0xff]
    %v408 = vld [vmem:[#allocation7 + $0x150] sm:$0xff]
    %v409 = vld [vmem:[#allocation7 + $0x158] sm:$0xff]
    %v410 = vld [vmem:[#allocation7 + $0x160] sm:$0xff]
    %v411 = vld [vmem:[#allocation7 + $0x168] sm:$0xff]
    %v412 = vld [vmem:[#allocation7 + $0x170] sm:$0xff]
    %v413 = vld [vmem:[#allocation7 + $0x178] sm:$0xff]
    %v414 = vlaneseq
    %v415 = vshrl.u32 %v414, 7
    %v416 = vsub.s32 1, %v415
    %v417 = vrot.slane %v103, %v416
    %v418 = vlaneseq
    %v419 = vshrl.u32 %v418, 7
    %v420 = vsub.s32 1, %v419
    %v421 = vrot.slane %v104, %v420
    %v470 = vunpack.c.l.b16 %v366
    %v471 = vunpack.c.h.b16 %v366
    %v472 = vunpack.c.l.b16 %v367
    %v473 = vunpack.c.h.b16 %v367
    %v474 = vunpack.c.l.b16 %v368
    %v475 = vunpack.c.h.b16 %v368
    %v476 = vunpack.c.l.b16 %v369
    %v477 = vunpack.c.h.b16 %v369
    %v478 = vunpack.c.l.b16 %v370
    %v479 = vunpack.c.h.b16 %v370
    %v480 = vunpack.c.l.b16 %v371
    %v481 = vunpack.c.h.b16 %v371
    %v482 = vunpack.c.l.b16 %v372
    %v483 = vunpack.c.h.b16 %v372
    %v484 = vunpack.c.l.b16 %v373
    %v485 = vunpack.c.h.b16 %v373
    %v486 = vunpack.c.l.b16 %v374
    %v487 = vunpack.c.h.b16 %v374
    %v488 = vunpack.c.l.b16 %v375
    %v489 = vunpack.c.h.b16 %v375
    %v490 = vunpack.c.l.b16 %v376
    %v491 = vunpack.c.h.b16 %v376
    %v492 = vunpack.c.l.b16 %v377
    %v493 = vunpack.c.h.b16 %v377
    %v494 = vunpack.c.l.b16 %v378
    %v495 = vunpack.c.h.b16 %v378
    %v496 = vunpack.c.l.b16 %v379
    %v497 = vunpack.c.h.b16 %v379
    %v498 = vunpack.c.l.b16 %v380
    %v499 = vunpack.c.h.b16 %v380
    %v500 = vunpack.c.l.b16 %v381
    %v501 = vunpack.c.h.b16 %v381
    %v502 = vunpack.c.l.b16 %v382
    %v503 = vunpack.c.h.b16 %v382
    %v504 = vunpack.c.l.b16 %v383
    %v505 = vunpack.c.h.b16 %v383
    %v506 = vunpack.c.l.b16 %v384
    %v507 = vunpack.c.h.b16 %v384
    %v508 = vunpack.c.l.b16 %v385
    %v509 = vunpack.c.h.b16 %v385
    %v510 = vunpack.c.l.b16 %v386
    %v511 = vunpack.c.h.b16 %v386
    %v512 = vunpack.c.l.b16 %v387
    %v513 = vunpack.c.h.b16 %v387
    %v514 = vunpack.c.l.b16 %v388
    %v515 = vunpack.c.h.b16 %v388
    %v516 = vunpack.c.l.b16 %v389
    %v517 = vunpack.c.h.b16 %v389
    %v518 = vunpack.c.l.b16 %v390
    %v519 = vunpack.c.h.b16 %v390
    %v520 = vunpack.c.l.b16 %v391
    %v521 = vunpack.c.h.b16 %v391
    %v522 = vunpack.c.l.b16 %v392
    %v523 = vunpack.c.h.b16 %v392
    %v524 = vunpack.c.l.b16 %v393
    %v525 = vunpack.c.h.b16 %v393
    %v526 = vunpack.c.l.b16 %v394
    %v527 = vunpack.c.h.b16 %v394
    %v528 = vunpack.c.l.b16 %v395
    %v529 = vunpack.c.h.b16 %v395
    %v530 = vunpack.c.l.b16 %v396
    %v531 = vunpack.c.h.b16 %v396
    %v532 = vunpack.c.l.b16 %v397
    %v533 = vunpack.c.h.b16 %v397
    %v534 = vunpack.c.l.b16 %v398
    %v535 = vunpack.c.h.b16 %v398
    %v536 = vunpack.c.l.b16 %v399
    %v537 = vunpack.c.h.b16 %v399
    %v538 = vunpack.c.l.b16 %v400
    %v539 = vunpack.c.h.b16 %v400
    %v540 = vunpack.c.l.b16 %v401
    %v541 = vunpack.c.h.b16 %v401
    %v542 = vunpack.c.l.b16 %v402
    %v543 = vunpack.c.h.b16 %v402
    %v544 = vunpack.c.l.b16 %v403
    %v545 = vunpack.c.h.b16 %v403
    %v546 = vunpack.c.l.b16 %v404
    %v547 = vunpack.c.h.b16 %v404
    %v548 = vunpack.c.l.b16 %v405
    %v549 = vunpack.c.h.b16 %v405
    %v550 = vunpack.c.l.b16 %v406
    %v551 = vunpack.c.h.b16 %v406
    %v552 = vunpack.c.l.b16 %v407
    %v553 = vunpack.c.h.b16 %v407
    %v554 = vunpack.c.l.b16 %v408
    %v555 = vunpack.c.h.b16 %v408
    %v556 = vunpack.c.l.b16 %v409
    %v557 = vunpack.c.h.b16 %v409
    %v558 = vunpack.c.l.b16 %v410
    %v559 = vunpack.c.h.b16 %v410
    %v560 = vunpack.c.l.b16 %v411
    %v561 = vunpack.c.h.b16 %v411
    %v562 = vunpack.c.l.b16 %v412
    %v563 = vunpack.c.h.b16 %v412
    %v564 = vunpack.c.l.b16 %v413
    %v565 = vunpack.c.h.b16 %v413
    %v566 = vpack.c.b16 %v472, %v470
    %v567 = vpack.c.b16 %v473, %v471
    %v568 = vpack.c.b16 %v476, %v474
    %v569 = vpack.c.b16 %v477, %v475
    %v570 = vpack.c.b16 %v480, %v478
    %v571 = vpack.c.b16 %v481, %v479
    %v572 = vpack.c.b16 %v484, %v482
    %v573 = vpack.c.b16 %v485, %v483
    %v574 = vpack.c.b16 %v488, %v486
    %v575 = vpack.c.b16 %v489, %v487
    %v576 = vpack.c.b16 %v492, %v490
    %v577 = vpack.c.b16 %v493, %v491
    %v578 = vpack.c.b16 %v496, %v494
    %v579 = vpack.c.b16 %v497, %v495
    %v580 = vpack.c.b16 %v500, %v498
    %v581 = vpack.c.b16 %v501, %v499
    %v582 = vpack.c.b16 %v504, %v502
    %v583 = vpack.c.b16 %v505, %v503
    %v584 = vpack.c.b16 %v508, %v506
    %v585 = vpack.c.b16 %v509, %v507
    %v586 = vpack.c.b16 %v512, %v510
    %v587 = vpack.c.b16 %v513, %v511
    %v588 = vpack.c.b16 %v516, %v514
    %v589 = vpack.c.b16 %v517, %v515
    %v590 = vpack.c.b16 %v520, %v518
    %v591 = vpack.c.b16 %v521, %v519
    %v592 = vpack.c.b16 %v524, %v522
    %v593 = vpack.c.b16 %v525, %v523
    %v594 = vpack.c.b16 %v528, %v526
    %v595 = vpack.c.b16 %v529, %v527
    %v596 = vpack.c.b16 %v532, %v530
    %v597 = vpack.c.b16 %v533, %v531
    %v598 = vpack.c.b16 %v536, %v534
    %v599 = vpack.c.b16 %v537, %v535
    %v600 = vpack.c.b16 %v540, %v538
    %v601 = vpack.c.b16 %v541, %v539
    %v602 = vpack.c.b16 %v544, %v542
    %v603 = vpack.c.b16 %v545, %v543
    %v604 = vpack.c.b16 %v548, %v546
    %v605 = vpack.c.b16 %v549, %v547
    %v606 = vpack.c.b16 %v552, %v550
    %v607 = vpack.c.b16 %v553, %v551
    %v608 = vpack.c.b16 %v556, %v554
    %v609 = vpack.c.b16 %v557, %v555
    %v610 = vpack.c.b16 %v560, %v558
    %v611 = vpack.c.b16 %v561, %v559
    %v612 = vpack.c.b16 %v564, %v562
    %v613 = vpack.c.b16 %v565, %v563
    %662 = vmatprep.subr.bf16.mxu0 %v567
    %663 = vmatpush1.bf16.msra.mxu0 %v566
    %664 = vmatprep.subr.bf16.mxu0 %v569
    %665 = vmatpush1.bf16.msra.mxu0 %v568
    %666 = vmatprep.subr.bf16.mxu0 %v571
    %667 = vmatpush1.bf16.msra.mxu0 %v570
    %668 = vmatprep.subr.bf16.mxu0 %v573
    %669 = vmatpush1.bf16.msra.mxu0 %v572
    %670 = vmatprep.subr.bf16.mxu0 %v575
    %671 = vmatpush1.bf16.msra.mxu0 %v574
    %672 = vmatprep.subr.bf16.mxu0 %v577
    %673 = vmatpush1.bf16.msra.mxu0 %v576
    %674 = vmatprep.subr.bf16.mxu0 %v579
    %675 = vmatpush1.bf16.msra.mxu0 %v578
    %676 = vmatprep.subr.bf16.mxu0 %v581
    %677 = vmatpush1.bf16.msra.mxu0 %v580
    %678 = vmatprep.subr.bf16.mxu0 %v583
    %679 = vmatpush1.bf16.msra.mxu0 %v582
    %680 = vmatprep.subr.bf16.mxu0 %v585
    %681 = vmatpush1.bf16.msra.mxu0 %v584
    %682 = vmatprep.subr.bf16.mxu0 %v587
    %683 = vmatpush1.bf16.msra.mxu0 %v586
    %684 = vmatprep.subr.bf16.mxu0 %v589
    %685 = vmatpush1.bf16.msra.mxu0 %v588
    %686 = vmatprep.subr.bf16.mxu0 %v591
    %687 = vmatpush1.bf16.msra.mxu0 %v590
    %688 = vmatprep.subr.bf16.mxu0 %v593
    %689 = vmatpush1.bf16.msra.mxu0 %v592
    %690 = vmatprep.subr.bf16.mxu0 %v595
    %691 = vmatpush1.bf16.msra.mxu0 %v594
    %692 = vmatprep.subr.bf16.mxu0 %v597
    %693 = vmatpush1.bf16.msra.mxu0 %v596
    %694 = vmatprep.mubr.bf16.mxu0 %v364
    %695 = vmatmul.mubr.bf16.gmra.mrb[0].mxu0 %v363
    %v696 = vpop.f32.mrb[0].mxu0
    %v697 = vadd.f32 %v417, %v696
    %v698 = vpop.f32.mrb[0].mxu0
    %v699 = vadd.f32 %v421, %v698
    %v700 = vpop.f32.mrb[0].mxu0
    %v701 = vpop.f32.mrb[0].mxu0
    %702 = vdwg.mxu0
    %703 = vmatprep.subr.bf16.mxu0 %v599
    %704 = vmatpush1.bf16.msra.mxu0 %v598
    %705 = vmatprep.subr.bf16.mxu0 %v601
    %706 = vmatpush1.bf16.msra.mxu0 %v600
    %707 = vmatprep.subr.bf16.mxu0 %v603
    %708 = vmatpush1.bf16.msra.mxu0 %v602
    %709 = vmatprep.subr.bf16.mxu0 %v605
    %710 = vmatpush1.bf16.msra.mxu0 %v604
    %711 = vmatprep.subr.bf16.mxu0 %v607
    %712 = vmatpush1.bf16.msra.mxu0 %v606
    %713 = vmatprep.subr.bf16.mxu0 %v609
    %714 = vmatpush1.bf16.msra.mxu0 %v608
    %715 = vmatprep.subr.bf16.mxu0 %v611
    %716 = vmatpush1.bf16.msra.mxu0 %v610
    %717 = vmatprep.subr.bf16.mxu0 %v613
    %718 = vmatpush1.bf16.msra.mxu0 %v612
    %719 = vmatprep.subr.bf16.mxu0 0
    %720 = vmatpush1.bf16.msra.mxu0 0
    %721 = vmatprep.subr.bf16.mxu0 0
    %722 = vmatpush1.bf16.msra.mxu0 0
    %723 = vmatprep.subr.bf16.mxu0 0
    %724 = vmatpush1.bf16.msra.mxu0 0
    %725 = vmatprep.subr.bf16.mxu0 0
    %726 = vmatpush1.bf16.msra.mxu0 0
    %727 = vmatprep.subr.bf16.mxu0 0
    %728 = vmatpush1.bf16.msra.mxu0 0
    %729 = vmatprep.subr.bf16.mxu0 0
    %730 = vmatpush1.bf16.msra.mxu0 0
    %731 = vmatprep.subr.bf16.mxu0 0
    %732 = vmatpush1.bf16.msra.mxu0 0
    %733 = vmatprep.subr.bf16.mxu0 0
    %734 = vmatpush1.bf16.msra.mxu0 0
    %735 = vmatprep.mubr.bf16.mxu0 0
    %736 = vmatmul.mubr.bf16.gmra.mrb[0].mxu0 %v365
    %v737 = vpop.f32.mrb[0].mxu0
    %v738 = vadd.f32 %v697, %v737
    %v739 = vpop.f32.mrb[0].mxu0
    %v740 = vadd.f32 %v699, %v739
    %v741 = vpop.f32.mrb[0].mxu0
    %v742 = vpop.f32.mrb[0].mxu0
    %743 = vdwg.mxu0
    %v744 = vmax.f32 %v738, 0.0
    %v745 = vmax.f32 %v740, 0.0
    %v746 = vpack.c.bf16 %v744, %v744
    %v747 = vpack.c.bf16 %v745, %v745
    %v748 = vld [vmem:[#allocation8] sm:$0xff]
    %v749 = vld [vmem:[#allocation8 + $0x8] sm:$0xff]
    %v750 = vld [vmem:[#allocation8 + $0x10] sm:$0xff]
    %v751 = vld [vmem:[#allocation8 + $0x18] sm:$0xff]
    %v752 = vld [vmem:[#allocation8 + $0x20] sm:$0xff]
    %v753 = vld [vmem:[#allocation8 + $0x28] sm:$0xff]
    %v754 = vld [vmem:[#allocation8 + $0x30] sm:$0xff]
    %v755 = vld [vmem:[#allocation8 + $0x38] sm:$0xff]
    %v756 = vld [vmem:[#allocation8 + $0x40] sm:$0xff]
    %v757 = vld [vmem:[#allocation8 + $0x48] sm:$0xff]
    %v758 = vld [vmem:[#allocation8 + $0x50] sm:$0xff]
    %v759 = vld [vmem:[#allocation8 + $0x58] sm:$0xff]
    %v760 = vld [vmem:[#allocation8 + $0x60] sm:$0xff]
    %v761 = vld [vmem:[#allocation8 + $0x68] sm:$0xff]
    %v762 = vld [vmem:[#allocation8 + $0x70] sm:$0xff]
    %v763 = vld [vmem:[#allocation8 + $0x78] sm:$0xff]
    %v764 = vld [vmem:[#allocation8 + $0x80] sm:$0xff]
    %v765 = vld [vmem:[#allocation8 + $0x88] sm:$0xff]
    %v766 = vld [vmem:[#allocation8 + $0x90] sm:$0xff]
    %v767 = vld [vmem:[#allocation8 + $0x98] sm:$0xff]
    %v768 = vld [vmem:[#allocation8 + $0xa0] sm:$0xff]
    %v769 = vld [vmem:[#allocation8 + $0xa8] sm:$0xff]
    %v770 = vld [vmem:[#allocation8 + $0xb0] sm:$0xff]
    %v771 = vld [vmem:[#allocation8 + $0xb8] sm:$0xff]
    %v772 = vld [vmem:[#allocation8 + $0xc0] sm:$0xff]
    %v773 = vld [vmem:[#allocation8 + $0xc8] sm:$0xff]
    %v774 = vld [vmem:[#allocation8 + $0xd0] sm:$0xff]
    %v775 = vld [vmem:[#allocation8 + $0xd8] sm:$0xff]
    %v776 = vld [vmem:[#allocation8 + $0xe0] sm:$0xff]
    %v777 = vld [vmem:[#allocation8 + $0xe8] sm:$0xff]
    %v778 = vld [vmem:[#allocation8 + $0xf0] sm:$0xff]
    %v779 = vld [vmem:[#allocation8 + $0xf8] sm:$0xff]
    %v780 = vlaneseq
    %v781 = vshrl.u32 %v780, 7
    %v782 = vsub.s32 2, %v781
    %v783 = vrot.slane %v103, %v782
    %v784 = vlaneseq
    %v785 = vshrl.u32 %v784, 7
    %v786 = vsub.s32 2, %v785
    %v787 = vrot.slane %v104, %v786
    %v820 = vunpack.c.l.b16 %v748
    %v821 = vunpack.c.h.b16 %v748
    %v822 = vunpack.c.l.b16 %v749
    %v823 = vunpack.c.h.b16 %v749
    %v824 = vunpack.c.l.b16 %v750
    %v825 = vunpack.c.h.b16 %v750
    %v826 = vunpack.c.l.b16 %v751
    %v827 = vunpack.c.h.b16 %v751
    %v828 = vunpack.c.l.b16 %v752
    %v829 = vunpack.c.h.b16 %v752
    %v830 = vunpack.c.l.b16 %v753
    %v831 = vunpack.c.h.b16 %v753
    %v832 = vunpack.c.l.b16 %v754
    %v833 = vunpack.c.h.b16 %v754
    %v834 = vunpack.c.l.b16 %v755
    %v835 = vunpack.c.h.b16 %v755
    %v836 = vunpack.c.l.b16 %v756
    %v837 = vunpack.c.h.b16 %v756
    %v838 = vunpack.c.l.b16 %v757
    %v839 = vunpack.c.h.b16 %v757
    %v840 = vunpack.c.l.b16 %v758
    %v841 = vunpack.c.h.b16 %v758
    %v842 = vunpack.c.l.b16 %v759
    %v843 = vunpack.c.h.b16 %v759
    %v844 = vunpack.c.l.b16 %v760
    %v845 = vunpack.c.h.b16 %v760
    %v846 = vunpack.c.l.b16 %v761
    %v847 = vunpack.c.h.b16 %v761
    %v848 = vunpack.c.l.b16 %v762
    %v849 = vunpack.c.h.b16 %v762
    %v850 = vunpack.c.l.b16 %v763
    %v851 = vunpack.c.h.b16 %v763
    %v852 = vunpack.c.l.b16 %v764
    %v853 = vunpack.c.h.b16 %v764
    %v854 = vunpack.c.l.b16 %v765
    %v855 = vunpack.c.h.b16 %v765
    %v856 = vunpack.c.l.b16 %v766
    %v857 = vunpack.c.h.b16 %v766
    %v858 = vunpack.c.l.b16 %v767
    %v859 = vunpack.c.h.b16 %v767
    %v860 = vunpack.c.l.b16 %v768
    %v861 = vunpack.c.h.b16 %v768
    %v862 = vunpack.c.l.b16 %v769
    %v863 = vunpack.c.h.b16 %v769
    %v864 = vunpack.c.l.b16 %v770
    %v865 = vunpack.c.h.b16 %v770
    %v866 = vunpack.c.l.b16 %v771
    %v867 = vunpack.c.h.b16 %v771
    %v868 = vunpack.c.l.b16 %v772
    %v869 = vunpack.c.h.b16 %v772
    %v870 = vunpack.c.l.b16 %v773
    %v871 = vunpack.c.h.b16 %v773
    %v872 = vunpack.c.l.b16 %v774
    %v873 = vunpack.c.h.b16 %v774
    %v874 = vunpack.c.l.b16 %v775
    %v875 = vunpack.c.h.b16 %v775
    %v876 = vunpack.c.l.b16 %v776
    %v877 = vunpack.c.h.b16 %v776
    %v878 = vunpack.c.l.b16 %v777
    %v879 = vunpack.c.h.b16 %v777
    %v880 = vunpack.c.l.b16 %v778
    %v881 = vunpack.c.h.b16 %v778
    %v882 = vunpack.c.l.b16 %v779
    %v883 = vunpack.c.h.b16 %v779
    %v884 = vpack.c.b16 %v822, %v820
    %v885 = vpack.c.b16 %v823, %v821
    %v886 = vpack.c.b16 %v826, %v824
    %v887 = vpack.c.b16 %v827, %v825
    %v888 = vpack.c.b16 %v830, %v828
    %v889 = vpack.c.b16 %v831, %v829
    %v890 = vpack.c.b16 %v834, %v832
    %v891 = vpack.c.b16 %v835, %v833
    %v892 = vpack.c.b16 %v838, %v836
    %v893 = vpack.c.b16 %v839, %v837
    %v894 = vpack.c.b16 %v842, %v840
    %v895 = vpack.c.b16 %v843, %v841
    %v896 = vpack.c.b16 %v846, %v844
    %v897 = vpack.c.b16 %v847, %v845
    %v898 = vpack.c.b16 %v850, %v848
    %v899 = vpack.c.b16 %v851, %v849
    %v900 = vpack.c.b16 %v854, %v852
    %v901 = vpack.c.b16 %v855, %v853
    %v902 = vpack.c.b16 %v858, %v856
    %v903 = vpack.c.b16 %v859, %v857
    %v904 = vpack.c.b16 %v862, %v860
    %v905 = vpack.c.b16 %v863, %v861
    %v906 = vpack.c.b16 %v866, %v864
    %v907 = vpack.c.b16 %v867, %v865
    %v908 = vpack.c.b16 %v870, %v868
    %v909 = vpack.c.b16 %v871, %v869
    %v910 = vpack.c.b16 %v874, %v872
    %v911 = vpack.c.b16 %v875, %v873
    %v912 = vpack.c.b16 %v878, %v876
    %v913 = vpack.c.b16 %v879, %v877
    %v914 = vpack.c.b16 %v882, %v880
    %v915 = vpack.c.b16 %v883, %v881
    %948 = vmatprep.subr.bf16.mxu0 %v885
    %949 = vmatpush1.bf16.msra.mxu0 %v884
    %950 = vmatprep.subr.bf16.mxu0 %v887
    %951 = vmatpush1.bf16.msra.mxu0 %v886
    %952 = vmatprep.subr.bf16.mxu0 %v889
    %953 = vmatpush1.bf16.msra.mxu0 %v888
    %954 = vmatprep.subr.bf16.mxu0 %v891
    %955 = vmatpush1.bf16.msra.mxu0 %v890
    %956 = vmatprep.subr.bf16.mxu0 %v893
    %957 = vmatpush1.bf16.msra.mxu0 %v892
    %958 = vmatprep.subr.bf16.mxu0 %v895
    %959 = vmatpush1.bf16.msra.mxu0 %v894
    %960 = vmatprep.subr.bf16.mxu0 %v897
    %961 = vmatpush1.bf16.msra.mxu0 %v896
    %962 = vmatprep.subr.bf16.mxu0 %v899
    %963 = vmatpush1.bf16.msra.mxu0 %v898
    %964 = vmatprep.subr.bf16.mxu0 %v901
    %965 = vmatpush1.bf16.msra.mxu0 %v900
    %966 = vmatprep.subr.bf16.mxu0 %v903
    %967 = vmatpush1.bf16.msra.mxu0 %v902
    %968 = vmatprep.subr.bf16.mxu0 %v905
    %969 = vmatpush1.bf16.msra.mxu0 %v904
    %970 = vmatprep.subr.bf16.mxu0 %v907
    %971 = vmatpush1.bf16.msra.mxu0 %v906
    %972 = vmatprep.subr.bf16.mxu0 %v909
    %973 = vmatpush1.bf16.msra.mxu0 %v908
    %974 = vmatprep.subr.bf16.mxu0 %v911
    %975 = vmatpush1.bf16.msra.mxu0 %v910
    %976 = vmatprep.subr.bf16.mxu0 %v913
    %977 = vmatpush1.bf16.msra.mxu0 %v912
    %978 = vmatprep.subr.bf16.mxu0 %v915
    %979 = vmatpush1.bf16.msra.mxu0 %v914
    %980 = vmatprep.mubr.bf16.mxu0 %v747
    %981 = vmatmul.mubr.bf16.gmra.mrb[0].mxu0 %v746
    %v982 = vpop.f32.mrb[0].mxu0
    %v983 = vadd.f32 %v783, %v982
    %v984 = vpop.f32.mrb[0].mxu0
    %v985 = vadd.f32 %v787, %v984
    %v986 = vpop.f32.mrb[0].mxu0
    %v987 = vpop.f32.mrb[0].mxu0
    %988 = vdwg.mxu0
    %v989 = vmax.f32 %v983, 0.0
    %v990 = vmax.f32 %v985, 0.0
    %v991 = vpack.c.bf16 %v989, %v989
    %v992 = vpack.c.bf16 %v990, %v990
    %v993 = vld [vmem:[#allocation10] sm:$0xf]
    %v994 = vld [vmem:[#allocation10 + $0x4] sm:$0xf]
    %v995 = vld [vmem:[#allocation10 + $0x8] sm:$0xf]
    %v996 = vld [vmem:[#allocation10 + $0xc] sm:$0xf]
    %v997 = vld [vmem:[#allocation10 + $0x10] sm:$0xf]
    %v998 = vld [vmem:[#allocation10 + $0x14] sm:$0xf]
    %v999 = vld [vmem:[#allocation10 + $0x18] sm:$0xf]
    %v1000 = vld [vmem:[#allocation10 + $0x1c] sm:$0xf]
    %v1001 = vld [vmem:[#allocation10 + $0x20] sm:$0xf]
    %v1002 = vld [vmem:[#allocation10 + $0x24] sm:$0xf]
    %v1003 = vld [vmem:[#allocation10 + $0x28] sm:$0xf]
    %v1004 = vld [vmem:[#allocation10 + $0x2c] sm:$0xf]
    %v1005 = vld [vmem:[#allocation10 + $0x30] sm:$0xf]
    %v1006 = vld [vmem:[#allocation10 + $0x34] sm:$0xf]
    %v1007 = vld [vmem:[#allocation10 + $0x38] sm:$0xf]
    %v1008 = vld [vmem:[#allocation10 + $0x3c] sm:$0xf]
    %v1009 = vld [vmem:[#allocation10 + $0x40] sm:$0xf]
    %v1010 = vld [vmem:[#allocation10 + $0x44] sm:$0xf]
    %v1011 = vld [vmem:[#allocation10 + $0x48] sm:$0xf]
    %v1012 = vld [vmem:[#allocation10 + $0x4c] sm:$0xf]
    %v1013 = vld [vmem:[#allocation10 + $0x50] sm:$0xf]
    %v1014 = vld [vmem:[#allocation10 + $0x54] sm:$0xf]
    %v1015 = vld [vmem:[#allocation10 + $0x58] sm:$0xf]
    %v1016 = vld [vmem:[#allocation10 + $0x5c] sm:$0xf]
    %v1017 = vld [vmem:[#allocation10 + $0x60] sm:$0xf]
    %v1018 = vld [vmem:[#allocation10 + $0x64] sm:$0xf]
    %v1019 = vld [vmem:[#allocation10 + $0x68] sm:$0xf]
    %v1020 = vld [vmem:[#allocation10 + $0x6c] sm:$0xf]
    %v1021 = vld [vmem:[#allocation10 + $0x70] sm:$0xf]
    %v1022 = vld [vmem:[#allocation10 + $0x74] sm:$0xf]
    %v1023 = vld [vmem:[#allocation10 + $0x78] sm:$0xf]
    %v1024 = vld [vmem:[#allocation10 + $0x7c] sm:$0xf]
    %v1025 = vlaneseq
    %v1026 = vshrl.u32 %v1025, 7
    %v1027 = vsub.s32 3, %v1026
    %v1028 = vrot.slane %v103, %v1027
    %v1061 = vunpack.c.l.b16 %v993
    %v1062 = vunpack.c.l.b16 %v994
    %v1063 = vunpack.c.l.b16 %v995
    %v1064 = vunpack.c.l.b16 %v996
    %v1065 = vunpack.c.l.b16 %v997
    %v1066 = vunpack.c.l.b16 %v998
    %v1067 = vunpack.c.l.b16 %v999
    %v1068 = vunpack.c.l.b16 %v1000
    %v1069 = vunpack.c.l.b16 %v1001
    %v1070 = vunpack.c.l.b16 %v1002
    %v1071 = vunpack.c.l.b16 %v1003
    %v1072 = vunpack.c.l.b16 %v1004
    %v1073 = vunpack.c.l.b16 %v1005
    %v1074 = vunpack.c.l.b16 %v1006
    %v1075 = vunpack.c.l.b16 %v1007
    %v1076 = vunpack.c.l.b16 %v1008
    %v1077 = vunpack.c.l.b16 %v1009
    %v1078 = vunpack.c.l.b16 %v1010
    %v1079 = vunpack.c.l.b16 %v1011
    %v1080 = vunpack.c.l.b16 %v1012
    %v1081 = vunpack.c.l.b16 %v1013
    %v1082 = vunpack.c.l.b16 %v1014
    %v1083 = vunpack.c.l.b16 %v1015
    %v1084 = vunpack.c.l.b16 %v1016
    %v1085 = vunpack.c.l.b16 %v1017
    %v1086 = vunpack.c.l.b16 %v1018
    %v1087 = vunpack.c.l.b16 %v1019
    %v1088 = vunpack.c.l.b16 %v1020
    %v1089 = vunpack.c.l.b16 %v1021
    %v1090 = vunpack.c.l.b16 %v1022
    %v1091 = vunpack.c.l.b16 %v1023
    %v1092 = vunpack.c.l.b16 %v1024
    %v1093 = vpack.c.b16 %v1062, %v1061
    %v1094 = vpack.c.b16 %v1064, %v1063
    %v1095 = vpack.c.b16 %v1066, %v1065
    %v1096 = vpack.c.b16 %v1068, %v1067
    %v1097 = vpack.c.b16 %v1070, %v1069
    %v1098 = vpack.c.b16 %v1072, %v1071
    %v1099 = vpack.c.b16 %v1074, %v1073
    %v1100 = vpack.c.b16 %v1076, %v1075
    %v1101 = vpack.c.b16 %v1078, %v1077
    %v1102 = vpack.c.b16 %v1080, %v1079
    %v1103 = vpack.c.b16 %v1082, %v1081
    %v1104 = vpack.c.b16 %v1084, %v1083
    %v1105 = vpack.c.b16 %v1086, %v1085
    %v1106 = vpack.c.b16 %v1088, %v1087
    %v1107 = vpack.c.b16 %v1090, %v1089
    %v1108 = vpack.c.b16 %v1092, %v1091
    %1125 = vmatprep.subr.bf16.mxu0 0
    %1126 = vmatpush1.bf16.msra.mxu0 %v1093
    %1127 = vmatprep.subr.bf16.mxu0 0
    %1128 = vmatpush1.bf16.msra.mxu0 %v1094
    %1129 = vmatprep.subr.bf16.mxu0 0
    %1130 = vmatpush1.bf16.msra.mxu0 %v1095
    %1131 = vmatprep.subr.bf16.mxu0 0
    %1132 = vmatpush1.bf16.msra.mxu0 %v1096
    %1133 = vmatprep.subr.bf16.mxu0 0
    %1134 = vmatpush1.bf16.msra.mxu0 %v1097
    %1135 = vmatprep.subr.bf16.mxu0 0
    %1136 = vmatpush1.bf16.msra.mxu0 %v1098
    %1137 = vmatprep.subr.bf16.mxu0 0
    %1138 = vmatpush1.bf16.msra.mxu0 %v1099
    %1139 = vmatprep.subr.bf16.mxu0 0
    %1140 = vmatpush1.bf16.msra.mxu0 %v1100
    %1141 = vmatprep.subr.bf16.mxu0 0
    %1142 = vmatpush1.bf16.msra.mxu0 %v1101
    %1143 = vmatprep.subr.bf16.mxu0 0
    %1144 = vmatpush1.bf16.msra.mxu0 %v1102
    %1145 = vmatprep.subr.bf16.mxu0 0
    %1146 = vmatpush1.bf16.msra.mxu0 %v1103
    %1147 = vmatprep.subr.bf16.mxu0 0
    %1148 = vmatpush1.bf16.msra.mxu0 %v1104
    %1149 = vmatprep.subr.bf16.mxu0 0
    %1150 = vmatpush1.bf16.msra.mxu0 %v1105
    %1151 = vmatprep.subr.bf16.mxu0 0
    %1152 = vmatpush1.bf16.msra.mxu0 %v1106
    %1153 = vmatprep.subr.bf16.mxu0 0
    %1154 = vmatpush1.bf16.msra.mxu0 %v1107
    %1155 = vmatprep.subr.bf16.mxu0 0
    %1156 = vmatpush1.bf16.msra.mxu0 %v1108
    %1157 = vmatprep.mubr.bf16.mxu0 %v992
    %1158 = vmatmul.mubr.bf16.gmra.mrb[0].mxu0 %v991
    %v1159 = vpop.f32.mrb[0].mxu0
    %v1160 = vadd.f32 %v1028, %v1159
    %v1161 = vpop.f32.mrb[0].mxu0
    %v1162 = vpop.f32.mrb[0].mxu0
    %v1163 = vpop.f32.mrb[0].mxu0
    %1164 = vdwg.mxu0
    %v1165 = vtanh.pop %v1160
    %v1166 = vlaneseq
    %v1167 = vand.u32 %v1166, 127
    %v1168 = vunpack.c.l.bf16 %v106
    %1169 = vrot.lane.b32.xlu0 %v1168, 64
    %v1170 = vpop.permute.xlu0 %1169
    %vm1171 = vcmp.lt.s32.totalorder %v1167, 4
    %v1172 = vsel %vm1171, %v1170, 0.0
    %v1173 = vmul.f32 %v1172, %v1172
    %1174 = vadd.xlane.f32.xlu0 %v1173
    %v1175 = vpop.xlane.xlu0 %1174
    %v1176 = vmul.f32 %v1175, -0.5
    %v1177 = vlaneseq
    %v1178 = vshrl.u32 %v1177, 7
    %v1179 = vsub.s32 4, %v1178
    %v1180 = vrot.slane %v103, %v1179
    %v1181 = vmul.f32 %v1180, %v1172
    %v1182 = vadd.f32 %v1165, %v1181
    %v1183 = vlaneseq
    %v1184 = vshrl.u32 %v1183, 7
    %v1185 = vsub.s32 5, %v1184
    %v1186 = vrot.slane %v103, %v1185
    %v1187 = vadd.f32 %v1182, %v1186
    %vm1188 = vcmp.eq.s32.totalorder %v1167, 12
    %v1189 = vsel %vm1188, %v1176, 0.0
    %v1190 = vadd.f32 %v1187, %v1189
    %1191 = vst [vmem:[#allocation13] sm:$0xff] %v1190
    // Predicated region
    $region50: #{tpu_custom_call.1} parent=1 // pred_check
      _
    $region51: #{tpu_custom_call.1} parent=1 // pred_check_branch
      %1193 = sbr.rel (0) target = $region53
    $region52: #{tpu_custom_call.1} parent=1 // pred_region
      %s1195 = ssub.s32 128, 128
      %1196 = vsyncadd [#allocation4], %s1195
      %s1198 = sshll.u32 [#allocation13], 4
      %s1199 = int_to_ptr.vmem [resolvable:$true] %s1198
      %1201 = dma.vmem_to_hbm [thread:$0]  %s1199, 128, %s6, [#allocation4]
    $region53: #{tpu_custom_call.1} parent=1 // pred_fallthru
      _
    // Predicated region
    $region54: #{tpu_custom_call.1} parent=1 // pred_check
      _
    $region55: #{tpu_custom_call.1} parent=1 // pred_check_branch
      %1203 = sbr.rel (0) target = $region57
    $region56: #{tpu_custom_call.1} parent=1 // pred_region
      %1204 = dma.done [#allocation4], 128
    $region57: #{tpu_custom_call.1} parent=1 // pred_fallthru
      _
    %1205 = vsyncpa [#allocation3], 1
    %1206 = vsyncpa [#allocation6], 1
    %1207 = vsyncpa [#allocation9], 1
    %1208 = vsyncpa [#allocation12], 1
    %1209 = vsyncpa [#allocation4], 1

</llo_original>
